<compile_context>
chip_gen: v6e
topology: v6e:2x2x1
jax: 0.10.0
libtpu: 0.0.40
codegen_flags: <defaults>
</compile_context>

<pallas_src>
import math

import jax
import jax.numpy as jnp
from jax.experimental import pallas as pl
from jax.experimental.pallas import tpu as pltpu


# ----------------------------- kernels ------------------------------------


def _less_kernel_bool(x_ref, val_ref, o_ref):
    # x_ref: (TILE_ROWS, TILE_COLS), val_ref: (1, TILE_COLS) -> row broadcast.
    # Comparison happens in the promoted dtype in-register; store bool mask.
    o_ref[...] = x_ref[...] < val_ref[...]


def _less_kernel_i8(x_ref, val_ref, o_ref):
    o_ref[...] = (x_ref[...] < val_ref[...]).astype(jnp.int8)


# --------------------------- config helpers --------------------------------


def _target_block_bytes() -> int:
    # ~8 MiB input blocks on v7x (3.2 TB/s HBM: amortize the ~0.35 us/step
    # overhead), ~4 MiB elsewhere (v5e's scoped-VMEM default is 16 MiB; v6e
    # is already ~86% of roofline at 4 MiB).
    try:
        kind = jax.devices()[0].device_kind.lower()
    except Exception:
        kind = ""
    if "v7" in kind:
        return 8 * 1024 * 1024
    return 4 * 1024 * 1024


_BOOL_OUT_OK = None


def _bool_out_supported() -> bool:
    """One-time probe: can this Mosaic toolchain lower a bool kernel output?"""
    global _BOOL_OUT_OK
    if _BOOL_OUT_OK is None:
        try:
            px = jnp.zeros((32, 128), jnp.float32)
            pv = jnp.zeros((1, 128), jnp.float32)
            out = pl.pallas_call(
                _less_kernel_bool,
                out_shape=jax.ShapeDtypeStruct((32, 128), jnp.bool_),
            )(px, pv)
            jax.block_until_ready(out)
            _BOOL_OUT_OK = True
        except Exception:
            _BOOL_OUT_OK = False
    return _BOOL_OUT_OK


# ----------------------------- core call -----------------------------------


def _less_2d(x2d: jax.Array, val2d: jax.Array, out_dtype, kernel) -> jax.Array:
    """(x2d < val2d) with val2d of shape (1, W2) broadcast over rows."""
    r2, w2 = x2d.shape
    itemsize = jnp.dtype(x2d.dtype).itemsize
    block_bytes = _target_block_bytes()

    # --- Column (lane) tiling guard for very wide last dims. Only legal when
    #     w2 is a multiple of 128 (otherwise the only valid block width is
    #     the full array width).
    tile_cols = w2
    if w2 % 128 == 0 and 32 * w2 * itemsize > block_bytes:
        tile_cols = max(128, (block_bytes // (32 * itemsize)) // 128 * 128)

    # --- Row tiling: prefer a multiple of 32 sublanes (native (32,128) int8/
    #     bool output tiles -> unmasked writeback). Fall back toward 8 rows
    #     for extremely wide, non-128-aligned widths.
    rows_fit = block_bytes // (tile_cols * itemsize)
    if rows_fit >= 32:
        tile_rows = (rows_fit // 32) * 32
    else:
        # TODO(synk): widths so large that even 8 rows overflow scoped VMEM
        # would need vmem_limit_bytes raised; not expected for this operator.
        tile_rows = max(8, (rows_fit // 8) * 8)

    if tile_rows >= r2:
        tile_rows = r2
        # Keep >=2 grid steps on mid-size inputs so both v7x TensorCores get
        # work from the "parallel" row axis (no effect on 1-TC v5e/v6e).
        if r2 * w2 * itemsize > (1 << 20) and r2 >= 64:
            half = (r2 + 1) // 2
            tile_rows = ((half + 31) // 32) * 32

    grid = (pl.cdiv(r2, tile_rows), pl.cdiv(w2, tile_cols))

    cost = pl.CostEstimate(
        flops=r2 * w2,
        transcendentals=0,
        bytes_accessed=r2 * w2 * (itemsize + 1),
    )

    return pl.pallas_call(
        kernel,
        out_shape=jax.ShapeDtypeStruct((r2, w2), out_dtype),
        grid=grid,
        in_specs=[
            pl.BlockSpec((tile_rows, tile_cols), lambda i, j: (i, j)),
            pl.BlockSpec((1, tile_cols), lambda i, j: (0, j)),  # resident val
        ],
        out_specs=pl.BlockSpec((tile_rows, tile_cols), lambda i, j: (i, j)),
        compiler_params=pltpu.CompilerParams(
            dimension_semantics=("parallel", "parallel"),
        ),
        cost_estimate=cost,
    )(x2d, val2d)


# ------------------------------ wrapper -------------------------------------


def less(x: jax.Array, val: jax.Array) -> jax.Array:
    """Computes (x < val) with `val` broadcast along the last dim. Returns bool."""
    orig_shape = x.shape
    w = int(orig_shape[-1])
    assert val.shape == (w,), "val broadcasts along the last dim (torch.lt(x, val))"

    rows = 1
    for d in orig_shape[:-1]:
        rows *= int(d)

    if _bool_out_supported():
        out_dtype, kernel, post = jnp.bool_, _less_kernel_bool, (lambda o: o)
    else:
        out_dtype, kernel, post = (
            jnp.int8,
            _less_kernel_i8,
            (lambda o: o.astype(jnp.bool_)),
        )

    # Smallest p such that (p * w) % 128 == 0: fold p rows into the lane axis
    # so stores are full-width (lane-dense), `val` tiled p times to match.
    lane = 128
    p = lane // math.gcd(w, lane)

    x_flat = x.reshape(rows, w)  # native dtype, no cast

    if p > 1:
        rows_main = (rows // p) * p
        pieces = []
        if rows_main > 0:
            x_main = x_flat[:rows_main].reshape(rows_main // p, w * p)
            val_main = jnp.tile(val, p).reshape(1, w * p)
            out_main = post(_less_2d(x_main, val_main, out_dtype, kernel))
            pieces.append(out_main.reshape(rows_main, w))
        if rows - rows_main > 0:
            # Tiny (< p rows) ragged remainder: plain XLA compare, negligible.
            pieces.append(x_flat[rows_main:] < val.reshape(1, w))
        out_flat = pieces[0] if len(pieces) == 1 else jnp.concatenate(pieces, axis=0)
    else:
        out_flat = post(_less_2d(x_flat, val.reshape(1, w), out_dtype, kernel))

    return out_flat.reshape(orig_shape)


# ------------------------------ self-test -----------------------------------

if __name__ == "__main__":
    key = jax.random.PRNGKey(0)
    kx, kv, kx2 = jax.random.split(key, 3)

    # Small NCHW input consistent with the module's elementwise forward.
    x = jax.random.normal(kx, (2, 4, 16, 16), dtype=jnp.float32)
    # Deterministic "parameter" val (the FloatTensor from __init__), per last dim.
    val = jax.random.normal(kv, (16,), dtype=jnp.float32)

    out = less(x, val)
    jax.block_until_ready(out)

    ref = x < val.reshape(1, 1, 1, 16)
    assert out.shape == (2, 4, 16, 16)
    assert out.dtype == jnp.bool_
    assert bool(jnp.all(out == ref))

    # Exercise the ragged (rows % p != 0) prefix + tail path.
    x_rag = jax.random.normal(kx2, (3, 5, 16), dtype=jnp.float32)
    out_rag = less(x_rag, val)
    jax.block_until_ready(out_rag)
    ref_rag = x_rag < val.reshape(1, 1, 16)
    assert out_rag.dtype == jnp.bool_
    assert bool(jnp.all(out_rag == ref_rag))

    print("KERNEL_OK")
</pallas_src>

<mosaic_0001>
module attributes {stable_mosaic.version = 11 : i64} {
  func.func @_less_kernel_bool(%arg0: memref<32x128xf32, #tpu.memory_space<vmem>>, %arg1: memref<1x128xf32, #tpu.memory_space<vmem>>, %arg2: memref<32x128xi32, #tpu.memory_space<vmem>>) attributes {dimension_semantics = [], scalar_prefetch = 0 : i64, scratch_operands = 0 : i64, tpu.core_type = #tpu.core_type<tc>} {
    %c0 = arith.constant 0 : index
    %c0_0 = arith.constant 0 : index
    %0 = vector.load %arg0[%c0, %c0_0] : memref<32x128xf32, #tpu.memory_space<vmem>>, vector<32x128xf32>
    %c0_1 = arith.constant 0 : index
    %c0_2 = arith.constant 0 : index
    %1 = vector.load %arg1[%c0_1, %c0_2] : memref<1x128xf32, #tpu.memory_space<vmem>>, vector<1x128xf32>
    %2 = vector.broadcast %1 : vector<1x128xf32> to vector<32x128xf32>
    %3 = arith.cmpf olt, %0, %2 : vector<32x128xf32>
    %c0_3 = arith.constant 0 : index
    %c0_4 = arith.constant 0 : index
    %4 = vector.load %arg2[%c0_3, %c0_4] : memref<32x128xi32, #tpu.memory_space<vmem>>, vector<32x128xi32>
    %5 = arith.extui %3 : vector<32x128xi1> to vector<32x128xi32>
    %cst = arith.constant dense<0> : vector<32x128xi32>
    %6 = arith.cmpi ne, %4, %cst : vector<32x128xi32>
    tpu.vector_store %arg2[%c0_3, %c0_4], %5 {strides = array<i32>} : memref<32x128xi32, #tpu.memory_space<vmem>>, vector<32x128xi32>,
    return
  }
}

module attributes {stable_mosaic.version = 11 : i64} {
  func.func @_less_kernel_i8(%arg0: i32, %arg1: i32, %arg2: memref<16x128xf32, #tpu.memory_space<vmem>>, %arg3: memref<1x128xf32, #tpu.memory_space<vmem>>, %arg4: memref<16x128xi8, #tpu.memory_space<vmem>>) attributes {dimension_semantics = [#tpu.dimension_semantics<parallel>, #tpu.dimension_semantics<parallel>], iteration_bounds = array<i64: 1, 1>, scalar_prefetch = 0 : i64, scratch_operands = 0 : i64, tpu.core_type = #tpu.core_type<tc>, window_params = [{transform_indices = @transform_0, window_bounds = array<i64: 16, 128>}, {transform_indices = @transform_1, window_bounds = array<i64: 1, 128>}, {transform_indices = @transform_2, window_bounds = array<i64: 16, 128>}]} {
    %c0 = arith.constant 0 : index
    %c0_0 = arith.constant 0 : index
    %0 = vector.load %arg2[%c0, %c0_0] : memref<16x128xf32, #tpu.memory_space<vmem>>, vector<16x128xf32>
    %c0_1 = arith.constant 0 : index
    %c0_2 = arith.constant 0 : index
    %1 = vector.load %arg3[%c0_1, %c0_2] : memref<1x128xf32, #tpu.memory_space<vmem>>, vector<1x128xf32>
    %2 = vector.broadcast %1 : vector<1x128xf32> to vector<16x128xf32>
    %3 = arith.cmpf olt, %0, %2 : vector<16x128xf32>
    %4 = arith.extui %3 : vector<16x128xi1> to vector<16x128xi8>
    %c0_3 = arith.constant 0 : index
    %c0_4 = arith.constant 0 : index
    %5 = vector.load %arg4[%c0_3, %c0_4] : memref<16x128xi8, #tpu.memory_space<vmem>>, vector<16x128xi8>
    tpu.vector_store %arg4[%c0_3, %c0_4], %4 {strides = array<i32>} : memref<16x128xi8, #tpu.memory_space<vmem>>, vector<16x128xi8>,
    return
  }
  func.func @transform_0(%arg0: i32, %arg1: i32) -> (i32, i32) {
    %c0_i32 = arith.constant 0 : i32
    return %arg0, %arg1 : i32, i32
  }
  func.func @transform_1(%arg0: i32, %arg1: i32) -> (i32, i32) {
    %c0_i32 = arith.constant 0 : i32
    %c0_i32_0 = arith.constant 0 : i32
    return %c0_i32, %arg1 : i32, i32
  }
  func.func @transform_2(%arg0: i32, %arg1: i32) -> (i32, i32) {
    %c0_i32 = arith.constant 0 : i32
    return %arg0, %arg1 : i32, i32
  }
}

</mosaic_0001>

<llo_original>
// kernel: tpu_custom_call.1
$region0: #{tpu_custom_call.1}
  #allocation0 [shape = 'u32[]', space=smem, size = 0x4, offset = 0x4, fixed_abs, tag = 'smem constant byte address 0x4 - core index']
  #allocation1 [shape = 'u32[144,128]{1,0:T(1,128)}', space=vmem, size = 0x12000, scoped, tag = 'internal scratch']
  %s0 = inlined_call_operand.hbm [shape: f32[32,128], index: 0, kind: input, shape index: {}]
  %s1 = inlined_call_operand.vmem [shape: f32[1,128], index: 1, kind: input, shape index: {}]
  %s2 = inlined_call_operand.vmem [shape: s32[32,128], index: 2, kind: output, shape index: {}]
  %s3 = sld [smem:[#allocation0]]
  $region22: #{tpu_custom_call.1} parent=0
    _
  %s5 = ssub.s32 1, %s3
  %s6 = scalar_select 0, %s5, %s3
  $region1: #{tpu_custom_call.1} parent=0
    #allocation2 [shape = 'u8[16384]{0}', space=vmem, size = 0x4000, scoped, tag = 'input window, operand 0, single buffered']
    #allocation3 [shape = 's32[1]{0}', space=sflag, size = 0x4, scoped, tag = 'scoped memory for tpu_custom_call.1']
    %7 = vsyncpa [#allocation3], 0
    // Predicated region
    $region2: #{tpu_custom_call.1} parent=1 // pred_check
      _
    $region3: #{tpu_custom_call.1} parent=1 // pred_check_branch
      %9 = sbr.rel (0) target = $region5
    $region4: #{tpu_custom_call.1} parent=1 // pred_region
      %s11 = ssub.s32 512, 512
      %12 = vsyncadd [#allocation3], %s11
      %s13 = sshll.u32 [#allocation2], 4
      %s14 = int_to_ptr.vmem [resolvable:$true] %s13
      %19 = dma.hbm_to_vmem [thread:$0]  %s0, 512, %s14, [#allocation3], 128, 128, 8
    $region5: #{tpu_custom_call.1} parent=1 // pred_fallthru
      _
    // Predicated region
    $region6: #{tpu_custom_call.1} parent=1 // pred_check
      _
    $region7: #{tpu_custom_call.1} parent=1 // pred_check_branch
      %21 = sbr.rel (0) target = $region9
    $region8: #{tpu_custom_call.1} parent=1 // pred_region
      _
    $region9: #{tpu_custom_call.1} parent=1 // pred_fallthru
      _
    // Predicated region
    $region10: #{tpu_custom_call.1} parent=1 // pred_check
      _
    $region11: #{tpu_custom_call.1} parent=1 // pred_check_branch
      %23 = sbr.rel (0) target = $region13
    $region12: #{tpu_custom_call.1} parent=1 // pred_region
      %24 = dma.done [#allocation3], 512
    $region13: #{tpu_custom_call.1} parent=1 // pred_fallthru
      _
    %v25 = vld [vmem:[#allocation2] sm:$0xff]
    %v26 = vld [vmem:[#allocation2 + $0x8] sm:$0xff]
    %v27 = vld [vmem:[#allocation2 + $0x10] sm:$0xff]
    %v28 = vld [vmem:[#allocation2 + $0x18] sm:$0xff]
    %v29 = vld [vmem:[%s1] sm:$0x1]
    %v31 = vlaneseq
    %v32 = vshrl.u32 %v31, 7
    %v33 = vsub.s32 0, %v32
    %v34 = vrot.slane %v29, %v33
    %vm36 = vcmp.lt.f32.partialorder %v25, %v34
    %vm37 = vcmp.lt.f32.partialorder %v26, %v34
    %vm38 = vcmp.lt.f32.partialorder %v27, %v34
    %vm39 = vcmp.lt.f32.partialorder %v28, %v34
    %v40 = vsel %vm36, 1, 0
    %v41 = vsel %vm37, 1, 0
    %v42 = vsel %vm38, 1, 0
    %v43 = vsel %vm39, 1, 0
    %44 = vst [vmem:[%s2] sm:$0xff] %v40
    %45 = vst [vmem:[%s2 + $0x8] sm:$0xff] %v41
    %46 = vst [vmem:[%s2 + $0x10] sm:$0xff] %v42
    %47 = vst [vmem:[%s2 + $0x18] sm:$0xff] %v43
    // Predicated region
    $region14: #{tpu_custom_call.1} parent=1 // pred_check
      _
    $region15: #{tpu_custom_call.1} parent=1 // pred_check_branch
      %49 = sbr.rel (0) target = $region17
    $region16: #{tpu_custom_call.1} parent=1 // pred_region
      _
    $region17: #{tpu_custom_call.1} parent=1 // pred_fallthru
      _
    // Predicated region
    $region18: #{tpu_custom_call.1} parent=1 // pred_check
      _
    $region19: #{tpu_custom_call.1} parent=1 // pred_check_branch
      %51 = sbr.rel (0) target = $region21
    $region20: #{tpu_custom_call.1} parent=1 // pred_region
      _
    $region21: #{tpu_custom_call.1} parent=1 // pred_fallthru
      _
    %52 = vsyncpa [#allocation3], 1

// kernel: tpu_custom_call.1
$region0: #{tpu_custom_call.1}
  #allocation0 [shape = 'u32[]', space=smem, size = 0x4, offset = 0x4, fixed_abs, tag = 'smem constant byte address 0x4 - core index']
  #allocation1 [shape = 'u32[144,128]{1,0:T(1,128)}', space=vmem, size = 0x12000, scoped, tag = 'internal scratch']
  %s0 = inlined_call_operand.hbm [shape: f32[16,128], index: 0, kind: input, shape index: {}]
  %s1 = inlined_call_operand.vmem [shape: f32[1,128], index: 1, kind: input, shape index: {}]
  %s2 = inlined_call_operand.hbm [shape: s8[16,128], index: 2, kind: output, shape index: {}]
  %s3 = sld [smem:[#allocation0]]
  $region22: #{tpu_custom_call.1} parent=0
    _
  %s5 = ssub.s32 1, %s3
  %s6 = scalar_select 0, %s5, %s3
  $region1: #{tpu_custom_call.1} parent=0
    #allocation2 [shape = 'u8[8192]{0}', space=vmem, size = 0x2000, scoped, tag = 'input window, operand 0, single buffered']
    #allocation3 [shape = 's32[1]{0}', space=sflag, size = 0x4, scoped, tag = 'scoped memory for tpu_custom_call.1']
    #allocation4 [shape = 's32[1]{0}', space=sflag, size = 0x4, scoped, tag = 'scoped memory for tpu_custom_call.1']
    #allocation5 [shape = 'u8[2048]{0}', space=vmem, size = 0x800, scoped, tag = 'output window, operand 0, single buffered']
    %7 = vsyncpa [#allocation3], 0
    %8 = vsyncpa [#allocation4], 0
    // Predicated region
    $region2: #{tpu_custom_call.1} parent=1 // pred_check
      _
    $region3: #{tpu_custom_call.1} parent=1 // pred_check_branch
      %10 = sbr.rel (0) target = $region5
    $region4: #{tpu_custom_call.1} parent=1 // pred_region
      %s12 = ssub.s32 256, 256
      %13 = vsyncadd [#allocation3], %s12
      %s14 = sshll.u32 [#allocation2], 4
      %s15 = int_to_ptr.vmem [resolvable:$true] %s14
      %20 = dma.hbm_to_vmem [thread:$0]  %s0, 256, %s15, [#allocation3], 128, 128, 8
    $region5: #{tpu_custom_call.1} parent=1 // pred_fallthru
      _
    // Predicated region
    $region6: #{tpu_custom_call.1} parent=1 // pred_check
      _
    $region7: #{tpu_custom_call.1} parent=1 // pred_check_branch
      %22 = sbr.rel (0) target = $region9
    $region8: #{tpu_custom_call.1} parent=1 // pred_region
      _
    $region9: #{tpu_custom_call.1} parent=1 // pred_fallthru
      _
    // Predicated region
    $region10: #{tpu_custom_call.1} parent=1 // pred_check
      _
    $region11: #{tpu_custom_call.1} parent=1 // pred_check_branch
      %24 = sbr.rel (0) target = $region13
    $region12: #{tpu_custom_call.1} parent=1 // pred_region
      %25 = dma.done [#allocation3], 256
    $region13: #{tpu_custom_call.1} parent=1 // pred_fallthru
      _
    %v28 = vld [vmem:[#allocation2] sm:$0xff]
    %v29 = vld [vmem:[#allocation2 + $0x8] sm:$0xff]
    %v30 = vld [vmem:[%s1] sm:$0x1]
    %v32 = vlaneseq
    %v33 = vshrl.u32 %v32, 7
    %v34 = vsub.s32 0, %v33
    %v35 = vrot.slane %v30, %v34
    %vm37 = vcmp.lt.f32.partialorder %v28, %v35
    %vm38 = vcmp.lt.f32.partialorder %v29, %v35
    %vm39 = vmpackc.low %vm38, %vm37
    %vm40 = vmpackc.even %vm39, %vm39
    %v41 = vsel %vm40, 16843009, 0
    %v42 = vunpack.c.0.s8 %v41
    %v43 = vunpack.c.1.s8 %v41
    %v44 = vpack.c.b16 %v42, %v42
    %v45 = vpack.c.b8 %v44, %v44
    %v46 = vpack.c.b16 %v43, %v43
    %v47 = vpack.c.b8 %v46, %v46
    %48 = vst [vmem:[#allocation5] sm:$0x3] %v45
    %49 = vst [vmem:[#allocation5 + $0x2] sm:$0x3] %v47
    // Predicated region
    $region14: #{tpu_custom_call.1} parent=1 // pred_check
      _
    $region15: #{tpu_custom_call.1} parent=1 // pred_check_branch
      %51 = sbr.rel (0) target = $region17
    $region16: #{tpu_custom_call.1} parent=1 // pred_region
      %s53 = ssub.s32 64, 64
      %54 = vsyncadd [#allocation4], %s53
      %s55 = sshll.u32 [#allocation5], 4
      %s56 = int_to_ptr.vmem [resolvable:$true] %s55
      %61 = dma.vmem_to_hbm [thread:$0]  %s56, 64, %s2, [#allocation4], 32, 32, 2
    $region17: #{tpu_custom_call.1} parent=1 // pred_fallthru
      _
    // Predicated region
    $region18: #{tpu_custom_call.1} parent=1 // pred_check
      _
    $region19: #{tpu_custom_call.1} parent=1 // pred_check_branch
      %63 = sbr.rel (0) target = $region21
    $region20: #{tpu_custom_call.1} parent=1 // pred_region
      %64 = dma.done [#allocation4], 64
    $region21: #{tpu_custom_call.1} parent=1 // pred_fallthru
      _
    %65 = vsyncpa [#allocation3], 1
    %66 = vsyncpa [#allocation4], 1

</llo_original>
